<compile_context>
chip_gen: v5e
topology: v5e:2x2
jax: 0.10.0
libtpu: 0.0.40
codegen_flags: <defaults>
</compile_context>

<pallas_src>
import jax
import jax.numpy as jnp
from jax.experimental import pallas as pl
from jax.experimental.pallas import tpu as pltpu


def _locked_dropout_kernel(x_ref, mask_ref, o_ref):
    # x_ref:    (tB, tS, F) tile of the input
    # mask_ref: (tB, 1,  F) mask rows for those batch elements (broadcast over tS)
    # o_ref:    (tB, tS, F)
    o_ref[...] = x_ref[...] * mask_ref[...]


def _choose_tiles(B: int, S: int, F: int, dtype_bytes: int,
                  target_tile_bytes: int = 2 * 1024 * 1024):
    """Pick (tB, tS) so one x tile is ~target bytes.

    tS is a multiple of 8 (or the full S); if a whole (S, F) slab is still small,
    tB is grown so short-sequence / small-feature inputs still get big tiles.
    """
    row_bytes = max(1, F * dtype_bytes)
    tS = (target_tile_bytes // row_bytes) // 8 * 8
    tS = max(8, tS)
    if tS < S:
        return 1, tS
    # Whole sequence fits in one tile -> use full S and pack batch elements.
    tS = S
    slab_bytes = max(1, S * row_bytes)
    tB = max(1, target_tile_bytes // slab_bytes)
    tB = min(tB, B)
    return tB, tS


def locked_dropout(x: jax.Array, mask: jax.Array) -> jax.Array:
    """Apply a locked (timestep-shared) dropout mask.

    x:    (B, S, F)
    mask: (max_batch, 1, F) -- only the first B rows are used.
    """
    B, S, F = x.shape
    assert mask.shape[0] >= B and mask.shape[1] == 1 and mask.shape[2] == F

    # Only the first B rows matter; cast once (no-op if already x.dtype).
    mask_b = mask[:B]
    if mask_b.dtype != x.dtype:
        mask_b = mask_b.astype(x.dtype)

    dtype_bytes = jnp.dtype(x.dtype).itemsize
    tB, tS = _choose_tiles(B, S, F, dtype_bytes)
    n_batch_tiles = pl.cdiv(B, tB)
    n_seq_tiles = pl.cdiv(S, tS)

    grid_spec = pltpu.PrefetchScalarGridSpec(
        num_scalar_prefetch=0,
        grid=(n_batch_tiles, n_seq_tiles),
        in_specs=[
            # x tile: (tB, tS, F).
            pl.BlockSpec((tB, tS, F), lambda b, s: (b, s, 0)),
            # mask rows: block index constant over s -> not re-DMA'd per seq tile.
            pl.BlockSpec((tB, 1, F), lambda b, s: (b, 0, 0)),
        ],
        out_specs=pl.BlockSpec((tB, tS, F), lambda b, s: (b, s, 0)),
    )

    return pl.pallas_call(
        _locked_dropout_kernel,
        out_shape=jax.ShapeDtypeStruct((B, S, F), x.dtype),
        grid_spec=grid_spec,
        compiler_params=pltpu.CompilerParams(
            dimension_semantics=("parallel", "parallel"),
        ),
    )(x, mask_b)


def make_locked_dropout_mask(key, p_dropout: float, feature_size: int,
                             max_batch_size: int = 500,
                             dtype=jnp.float32) -> jax.Array:
    """Equivalent of LockedDropout.reset_mask():
    mask = ones(max_batch, 1, feature); mask.bernoulli_(1 - p).
    Generated directly in the compute dtype to avoid an extra cast pass."""
    keep = jax.random.bernoulli(key, p=1.0 - p_dropout,
                                shape=(max_batch_size, 1, feature_size))
    return keep.astype(dtype)


if __name__ == "__main__":
    # Small, deterministic example consistent with the module's forward:
    # (batch_size, seq_len, feature_size). F=128 keeps the output lane dim dense.
    B, S, F = 2, 8, 128
    p_dropout = 0.5
    max_batch_size = 16  # stand-in for the module default of 500 (keeps it small)

    key = jax.random.PRNGKey(0)
    kx, kmask = jax.random.split(key)

    x = jax.random.normal(kx, (B, S, F), dtype=jnp.float32)
    mask = make_locked_dropout_mask(kmask, p_dropout, F, max_batch_size,
                                    dtype=x.dtype)

    out = locked_dropout(x, mask)
    out = jax.block_until_ready(out)

    # Reference check in plain JAX (same semantics as the PyTorch forward).
    ref = mask[:B] * x  # (B,1,F) broadcast over seq dim
    assert out.shape == x.shape
    assert out.dtype == x.dtype
    assert jnp.allclose(out, ref), "Pallas LockedDropout mismatch vs reference"

    print("KERNEL_OK")
</pallas_src>

<mosaic_0001>
module attributes {stable_mosaic.version = 11 : i64} {
  func.func @_locked_dropout_kernel(%arg0: i32, %arg1: i32, %arg2: memref<2x8x128xf32, #tpu.memory_space<vmem>>, %arg3: memref<2x1x128xf32, #tpu.memory_space<vmem>>, %arg4: memref<2x8x128xf32, #tpu.memory_space<vmem>>) attributes {dimension_semantics = [#tpu.dimension_semantics<parallel>, #tpu.dimension_semantics<parallel>], iteration_bounds = array<i64: 1, 1>, scalar_prefetch = 0 : i64, scratch_operands = 0 : i64, tpu.core_type = #tpu.core_type<tc>, window_params = [{transform_indices = @transform_0, window_bounds = array<i64: 2, 8, 128>}, {transform_indices = @transform_1, window_bounds = array<i64: 2, 1, 128>}, {transform_indices = @transform_2, window_bounds = array<i64: 2, 8, 128>}]} {
    %c0 = arith.constant 0 : index
    %c0_0 = arith.constant 0 : index
    %c0_1 = arith.constant 0 : index
    %0 = vector.load %arg2[%c0, %c0_0, %c0_1] : memref<2x8x128xf32, #tpu.memory_space<vmem>>, vector<2x8x128xf32>
    %c0_2 = arith.constant 0 : index
    %c0_3 = arith.constant 0 : index
    %c0_4 = arith.constant 0 : index
    %1 = vector.load %arg3[%c0_2, %c0_3, %c0_4] : memref<2x1x128xf32, #tpu.memory_space<vmem>>, vector<2x1x128xf32>
    %2 = vector.broadcast %1 : vector<2x1x128xf32> to vector<2x8x128xf32>
    %3 = arith.mulf %0, %2 : vector<2x8x128xf32>
    %c0_5 = arith.constant 0 : index
    %c0_6 = arith.constant 0 : index
    %c0_7 = arith.constant 0 : index
    %4 = vector.load %arg4[%c0_5, %c0_6, %c0_7] : memref<2x8x128xf32, #tpu.memory_space<vmem>>, vector<2x8x128xf32>
    tpu.vector_store %arg4[%c0_5, %c0_6, %c0_7], %3 {strides = array<i32>} : memref<2x8x128xf32, #tpu.memory_space<vmem>>, vector<2x8x128xf32>,
    return
  }
  func.func @transform_0(%arg0: i32, %arg1: i32) -> (i32, i32, i32) {
    %c0_i32 = arith.constant 0 : i32
    %c0_i32_0 = arith.constant 0 : i32
    return %arg0, %arg1, %c0_i32 : i32, i32, i32
  }
  func.func @transform_1(%arg0: i32, %arg1: i32) -> (i32, i32, i32) {
    %c0_i32 = arith.constant 0 : i32
    %c0_i32_0 = arith.constant 0 : i32
    %c0_i32_1 = arith.constant 0 : i32
    return %arg0, %c0_i32, %c0_i32_0 : i32, i32, i32
  }
  func.func @transform_2(%arg0: i32, %arg1: i32) -> (i32, i32, i32) {
    %c0_i32 = arith.constant 0 : i32
    %c0_i32_0 = arith.constant 0 : i32
    return %arg0, %arg1, %c0_i32 : i32, i32, i32
  }
}

</mosaic_0001>

<llo_original>
// kernel: tpu_custom_call.1
$region0: #{tpu_custom_call.1}
  #allocation0 [shape = 'u32[]', space=smem, size = 0x4, offset = 0x4, fixed_abs, tag = 'smem constant byte address 0x4 - core index']
  #allocation1 [shape = 'u32[72,128]{1,0:T(1,128)}', space=vmem, size = 0x9000, scoped, tag = 'internal scratch']
  %s0 = inlined_call_operand.hbm [shape: f32[2,8,128], index: 0, kind: input, shape index: {}]
  %s1 = inlined_call_operand.hbm [shape: f32[2,1,128], index: 1, kind: input, shape index: {}]
  %s2 = inlined_call_operand.hbm [shape: f32[2,8,128], index: 2, kind: output, shape index: {}]
  %s3 = sld [smem:[#allocation0]]
  $region26: #{tpu_custom_call.1} parent=0
    _
  %s5 = ssub.s32 1, %s3
  %s6 = scalar_select 0, %s5, %s3
  $region1: #{tpu_custom_call.1} parent=0
    #allocation2 [shape = 'u8[8192]{0}', space=vmem, size = 0x2000, scoped, tag = 'input window, operand 0, single buffered']
    #allocation3 [shape = 's32[1]{0}', space=sflag, size = 0x4, scoped, tag = 'scoped memory for tpu_custom_call.1']
    #allocation4 [shape = 's32[1]{0}', space=sflag, size = 0x4, scoped, tag = 'scoped memory for tpu_custom_call.1']
    #allocation5 [shape = 'u8[1024]{0}', space=vmem, size = 0x400, scoped, tag = 'input window, operand 1, single buffered']
    #allocation6 [shape = 's32[1]{0}', space=sflag, size = 0x4, scoped, tag = 'scoped memory for tpu_custom_call.1']
    #allocation7 [shape = 'u8[8192]{0}', space=vmem, size = 0x2000, scoped, tag = 'output window, operand 0, single buffered']
    %7 = vsyncpa [#allocation3], 0
    %8 = vsyncpa [#allocation6], 0
    %9 = vsyncpa [#allocation4], 0
    // Predicated region
    $region2: #{tpu_custom_call.1} parent=1 // pred_check
      _
    $region3: #{tpu_custom_call.1} parent=1 // pred_check_branch
      %11 = sbr.rel (0) target = $region5
    $region4: #{tpu_custom_call.1} parent=1 // pred_region
      %13 = vsyncadd [#allocation3], 0
      %s14 = sshll.u32 %s0, 4
      %s15 = int_to_ptr.hbm [resolvable:$true] %s14
      %s16 = sshll.u32 [#allocation2], 4
      %s17 = int_to_ptr.vmem [resolvable:$true] %s16
      %22 = dma.hbm_to_vmem [thread:$0]  %s15, 256, %s17, [#allocation3], 128, 128, 8
    $region5: #{tpu_custom_call.1} parent=1 // pred_fallthru
      _
    // Predicated region
    $region6: #{tpu_custom_call.1} parent=1 // pred_check
      _
    $region7: #{tpu_custom_call.1} parent=1 // pred_check_branch
      %24 = sbr.rel (0) target = $region9
    $region8: #{tpu_custom_call.1} parent=1 // pred_region
      %26 = vsyncadd [#allocation6], 0
      %s27 = sshll.u32 %s1, 4
      %s28 = int_to_ptr.hbm [resolvable:$true] %s27
      %s29 = sshll.u32 [#allocation5], 4
      %s30 = int_to_ptr.vmem [resolvable:$true] %s29
      %35 = dma.hbm_to_vmem [thread:$0]  %s28, 32, %s30, [#allocation6], 16, 16, 1
    $region9: #{tpu_custom_call.1} parent=1 // pred_fallthru
      _
    // Predicated region
    $region10: #{tpu_custom_call.1} parent=1 // pred_check
      _
    $region11: #{tpu_custom_call.1} parent=1 // pred_check_branch
      %37 = sbr.rel (0) target = $region13
    $region12: #{tpu_custom_call.1} parent=1 // pred_region
      %39 = dma.done [#allocation3], 256
    $region13: #{tpu_custom_call.1} parent=1 // pred_fallthru
      _
    // Predicated region
    $region14: #{tpu_custom_call.1} parent=1 // pred_check
      _
    $region15: #{tpu_custom_call.1} parent=1 // pred_check_branch
      %41 = sbr.rel (0) target = $region17
    $region16: #{tpu_custom_call.1} parent=1 // pred_region
      %43 = dma.done [#allocation6], 32
    $region17: #{tpu_custom_call.1} parent=1 // pred_fallthru
      _
    %v44 = vld [vmem:[#allocation2] sm:$0xff]
    %v45 = vld [vmem:[#allocation2 + $0x8] sm:$0xff]
    %v46 = vld [vmem:[#allocation5] sm:$0x1]
    %v47 = vld [vmem:[#allocation5 + $0x1] sm:$0x1]
    %v50 = vperm.slane %v46, 0
    %v51 = vperm.slane %v47, 0
    %v54 = vmul.f32 %v44, %v50
    %v55 = vmul.f32 %v45, %v51
    %56 = vst [vmem:[#allocation7] sm:$0xff] %v54
    %57 = vst [vmem:[#allocation7 + $0x8] sm:$0xff] %v55
    // Predicated region
    $region18: #{tpu_custom_call.1} parent=1 // pred_check
      _
    $region19: #{tpu_custom_call.1} parent=1 // pred_check_branch
      %59 = sbr.rel (0) target = $region21
    $region20: #{tpu_custom_call.1} parent=1 // pred_region
      %61 = vsyncadd [#allocation4], 0
      %s62 = sshll.u32 [#allocation7], 4
      %s63 = int_to_ptr.vmem [resolvable:$true] %s62
      %s64 = sshll.u32 %s2, 4
      %s65 = int_to_ptr.hbm [resolvable:$true] %s64
      %70 = dma.vmem_to_hbm [thread:$0]  %s63, 256, %s65, [#allocation4], 128, 128, 8
    $region21: #{tpu_custom_call.1} parent=1 // pred_fallthru
      _
    // Predicated region
    $region22: #{tpu_custom_call.1} parent=1 // pred_check
      _
    $region23: #{tpu_custom_call.1} parent=1 // pred_check_branch
      %72 = sbr.rel (0) target = $region25
    $region24: #{tpu_custom_call.1} parent=1 // pred_region
      %74 = dma.done [#allocation4], 256
    $region25: #{tpu_custom_call.1} parent=1 // pred_fallthru
      _
    %75 = vsyncpa [#allocation3], 1
    %76 = vsyncpa [#allocation6], 1
    %77 = vsyncpa [#allocation4], 1

</llo_original>
